<compile_context>
chip_gen: v7x
topology: tpu7x:2x2x1
jax: 0.10.0
libtpu: 0.0.40
codegen_flags: <defaults>
</compile_context>

<pallas_src>
import functools

import jax
import jax.numpy as jnp
from jax.experimental import pallas as pl
from jax.experimental.pallas import tpu as pltpu


LANE = 128   # fused hidden width (2H padded) == output slab width == vreg lane width


def _actor_critic_kernel(obs_ref, slab_ref, out_ref, *,
                         num_actions, s_pad, r_w2, r_w3, r_b):
    x = obs_ref[...]                                                   # [TB, S_pad]

    # Static row views into the packed weight slab (starts are multiples of 8 -> free).
    w1 = slab_ref[0:s_pad, :]                                          # [S_pad, 128]
    w2 = slab_ref[r_w2:r_w2 + LANE, :]                                 # [128, 128]
    w3 = slab_ref[r_w3:r_w3 + LANE, :]                                 # [128, 128]
    b1 = slab_ref[r_b + 0:r_b + 1, :]                                  # [1, 128]
    b2 = slab_ref[r_b + 1:r_b + 2, :]                                  # [1, 128]
    b3 = slab_ref[r_b + 2:r_b + 3, :]                                  # [1, 128]

    # Fused actor|critic MLP: 3 MXU matmuls total, lane-dense [TB, 128] intermediates.
    h = jnp.tanh(jnp.dot(x, w1, preferred_element_type=jnp.float32) + b1)
    h = jnp.tanh(jnp.dot(h, w2, preferred_element_type=jnp.float32) + b2)
    z = jnp.dot(h, w3, preferred_element_type=jnp.float32) + b3       # [TB, 128]
    # lanes [0, A): actor logits, lane A: critic value, lanes > A: zero pad.

    # Softmax over actor lanes only (value / pad lanes masked out of the reduce).
    lane = jax.lax.broadcasted_iota(jnp.int32, z.shape, dimension=1)
    is_logit = lane < num_actions
    masked = jnp.where(is_logit, z, -1e30)
    m = jnp.max(masked, axis=-1, keepdims=True)
    e = jnp.where(is_logit, jnp.exp(masked - m), 0.0)
    denom = jnp.sum(e, axis=-1, keepdims=True)
    probs = e / denom                        # exact normalization (review: approx path dropped)

    # One lane-dense store: probs on actor lanes, raw z (value / zero pad) elsewhere.
    out_ref[...] = jnp.where(is_logit, probs, z)


def fuse_params(p):
    """Pack the six Linear layers into ONE (8,128)-tile-aligned f32 slab (done once, in JAX).

    Slab rows (lane width 128):
      [0, S_pad)              : W1  (cols [0,H)=actor, [H,2H)=critic, rest 0)
      [S_pad, S_pad+128)      : W2  block-diagonal, padded to 128x128
      [S_pad+128, S_pad+256)  : W3  block-diagonal (actor logits cols [0,A), critic col A)
      [S_pad+256, S_pad+264)  : bias rows b1 / b2 / b3 (+5 zero pad rows)
    """
    S, H = p["aw1"].shape
    A = p["aw3"].shape[1]
    assert 2 * H <= LANE and A + 1 <= LANE
    s_pad = ((S + 7) // 8) * 8

    r_w2 = s_pad
    r_w3 = r_w2 + LANE
    r_b = r_w3 + LANE
    rows = r_b + 8

    slab = jnp.zeros((rows, LANE), jnp.float32)
    # layer 1: actor | critic columns side by side
    slab = slab.at[0:S, 0:H].set(p["aw1"]).at[0:S, H:2 * H].set(p["cw1"])
    # layer 2: block-diagonal
    slab = slab.at[r_w2:r_w2 + H, 0:H].set(p["aw2"])
    slab = slab.at[r_w2 + H:r_w2 + 2 * H, H:2 * H].set(p["cw2"])
    # layer 3: block-diagonal, actor -> cols [0,A), critic -> col A
    slab = slab.at[r_w3:r_w3 + H, 0:A].set(p["aw3"])
    slab = slab.at[r_w3 + H:r_w3 + 2 * H, A:A + 1].set(p["cw3"])
    # biases as single rows in one 8-row block
    slab = slab.at[r_b + 0, 0:H].set(p["ab1"][0]).at[r_b + 0, H:2 * H].set(p["cb1"][0])
    slab = slab.at[r_b + 1, 0:H].set(p["ab2"][0]).at[r_b + 1, H:2 * H].set(p["cb2"][0])
    slab = slab.at[r_b + 2, 0:A].set(p["ab3"][0]).at[r_b + 2, A:A + 1].set(p["cb3"][0])

    return dict(slab=slab, num_states=S, s_pad=s_pad, num_actions=A,
                r_w2=r_w2, r_w3=r_w3, r_b=r_b)


def actor_critic_forward(obs, fused, *, batch_block=256):
    """Fused actor (softmax probs) + critic (value) forward pass."""
    B, S = obs.shape
    A = fused["num_actions"]
    s_pad = fused["s_pad"]
    slab = fused["slab"]

    kernel = functools.partial(
        _actor_critic_kernel, num_actions=A, s_pad=s_pad,
        r_w2=fused["r_w2"], r_w3=fused["r_w3"], r_b=fused["r_b"])

    if s_pad != S:  # pad feature dim to the slab's W1 row count
        obs = jnp.pad(obs, ((0, 0), (0, s_pad - S)))

    if B <= batch_block:
        # Grid-free: whole problem is a few full VMEM blocks; a 1-step grid would only
        # add pipeline prologue/epilogue and double-buffering overhead.
        out = pl.pallas_call(
            kernel,
            out_shape=jax.ShapeDtypeStruct((B, LANE), jnp.float32),
        )(obs, slab)
    else:
        # Large-batch path: 1-D "parallel" grid over the batch so both v7x TensorCores
        # get work; weight slab pinned to block (0,0) -> DMA'd once, stays resident.
        nb = pl.cdiv(B, batch_block)
        bp = nb * batch_block
        if bp != B:
            obs = jnp.pad(obs, ((0, bp - B), (0, 0)))
        out = pl.pallas_call(
            kernel,
            out_shape=jax.ShapeDtypeStruct((bp, LANE), jnp.float32),
            grid=(nb,),
            in_specs=[pl.BlockSpec((batch_block, s_pad), lambda i: (i, 0)),
                      pl.BlockSpec(slab.shape, lambda i: (0, 0))],
            out_specs=pl.BlockSpec((batch_block, LANE), lambda i: (i, 0)),
            compiler_params=pltpu.CompilerParams(
                dimension_semantics=("parallel",)),
        )(obs, slab)
        out = out[:B]

    probs = out[:, :A]
    value = out[:, A:A + 1]
    return probs, value


def init_params(key, num_states, num_actions, hidden_dim):
    """Deterministic PyTorch-style (uniform +/- 1/sqrt(fan_in)) initialization."""
    def linear(k, fan_in, fan_out):
        kw, kb = jax.random.split(k)
        bound = 1.0 / jnp.sqrt(fan_in)
        w = jax.random.uniform(kw, (fan_in, fan_out), jnp.float32, -bound, bound)
        b = jax.random.uniform(kb, (1, fan_out), jnp.float32, -bound, bound)
        return w, b

    keys = jax.random.split(key, 6)
    aw1, ab1 = linear(keys[0], num_states, hidden_dim)
    aw2, ab2 = linear(keys[1], hidden_dim, hidden_dim)
    aw3, ab3 = linear(keys[2], hidden_dim, num_actions)
    cw1, cb1 = linear(keys[3], num_states, hidden_dim)
    cw2, cb2 = linear(keys[4], hidden_dim, hidden_dim)
    cw3, cb3 = linear(keys[5], hidden_dim, 1)
    return dict(aw1=aw1, ab1=ab1, aw2=aw2, ab2=ab2, aw3=aw3, ab3=ab3,
                cw1=cw1, cb1=cb1, cw2=cw2, cb2=cb2, cw3=cw3, cb3=cb3)


def _reference(obs, p):
    h = jnp.tanh(obs @ p["aw1"] + p["ab1"])
    h = jnp.tanh(h @ p["aw2"] + p["ab2"])
    probs = jax.nn.softmax(h @ p["aw3"] + p["ab3"], axis=-1)
    v = jnp.tanh(obs @ p["cw1"] + p["cb1"])
    v = jnp.tanh(v @ p["cw2"] + p["cb2"])
    value = v @ p["cw3"] + p["cb3"]
    return probs, value


if __name__ == "__main__":
    num_states, num_actions, hidden_dim, batch = 16, 4, 32, 8

    key = jax.random.PRNGKey(0)
    k_obs, k_params, k_big = jax.random.split(key, 3)
    obs = jax.random.normal(k_obs, (batch, num_states), jnp.float32)
    params = init_params(k_params, num_states, num_actions, hidden_dim)
    fused = fuse_params(params)

    # small batch (act()/evaluate()-sized): grid-free path
    probs, value = actor_critic_forward(obs, fused)
    jax.block_until_ready((probs, value))

    ref_probs, ref_value = _reference(obs, params)
    assert jnp.allclose(probs, ref_probs, atol=2e-3, rtol=2e-3)
    assert jnp.allclose(value, ref_value, atol=2e-3, rtol=2e-3)
    assert jnp.allclose(jnp.sum(probs, axis=-1), 1.0, atol=1e-4)   # exact softmax normalization

    # rollout-sized batch: gridded "parallel" path (amortizes fixed overhead, uses both
    # v7x TensorCores); same fused weights.
    big_obs = jax.random.normal(k_big, (512, num_states), jnp.float32)
    bprobs, bvalue = actor_critic_forward(big_obs, fused, batch_block=256)
    jax.block_until_ready((bprobs, bvalue))
    rb_probs, rb_value = _reference(big_obs, params)
    assert jnp.allclose(bprobs, rb_probs, atol=2e-3, rtol=2e-3)
    assert jnp.allclose(bvalue, rb_value, atol=2e-3, rtol=2e-3)
    assert jnp.allclose(jnp.sum(bprobs, axis=-1), 1.0, atol=1e-4)

    print("KERNEL_OK")
</pallas_src>

<mosaic_0001>
module attributes {stable_mosaic.version = 11 : i64} {
  func.func @_actor_critic_kernel(%arg0: memref<8x16xf32, #tpu.memory_space<vmem>>, %arg1: memref<280x128xf32, #tpu.memory_space<vmem>>, %arg2: memref<8x128xf32, #tpu.memory_space<vmem>>) attributes {dimension_semantics = [], scalar_prefetch = 0 : i64, scratch_operands = 0 : i64, tpu.core_type = #tpu.core_type<tc>} {
    %c0 = arith.constant 0 : index
    %c0_0 = arith.constant 0 : index
    %0 = vector.load %arg0[%c0, %c0_0] : memref<8x16xf32, #tpu.memory_space<vmem>>, vector<8x16xf32>
    %c0_1 = arith.constant 0 : index
    %c0_2 = arith.constant 0 : index
    %1 = vector.load %arg1[%c0_1, %c0_2] : memref<280x128xf32, #tpu.memory_space<vmem>>, vector<16x128xf32>
    %c16 = arith.constant 16 : index
    %c0_3 = arith.constant 0 : index
    %2 = vector.load %arg1[%c16, %c0_3] : memref<280x128xf32, #tpu.memory_space<vmem>>, vector<128x128xf32>
    %c144 = arith.constant 144 : index
    %c0_4 = arith.constant 0 : index
    %3 = vector.load %arg1[%c144, %c0_4] : memref<280x128xf32, #tpu.memory_space<vmem>>, vector<128x128xf32>
    %c272 = arith.constant 272 : index
    %c0_5 = arith.constant 0 : index
    %4 = vector.load %arg1[%c272, %c0_5] : memref<280x128xf32, #tpu.memory_space<vmem>>, vector<1x128xf32>
    %c273 = arith.constant 273 : index
    %c0_6 = arith.constant 0 : index
    %5 = vector.load %arg1[%c273, %c0_6] : memref<280x128xf32, #tpu.memory_space<vmem>>, vector<1x128xf32>
    %c274 = arith.constant 274 : index
    %c0_7 = arith.constant 0 : index
    %6 = vector.load %arg1[%c274, %c0_7] : memref<280x128xf32, #tpu.memory_space<vmem>>, vector<1x128xf32>
    %cst = arith.constant dense<0.000000e+00> : vector<8x128xf32>
    %7 = tpu.matmul %0, %1, %cst {dimension_numbers = #tpu.dot_dimension_numbers<[1], [0], [0], [1], [0, 0, 1, 1], [], []>} : vector<8x16xf32>, vector<16x128xf32>, vector<8x128xf32> -> vector<8x128xf32>
    %8 = vector.broadcast %4 : vector<1x128xf32> to vector<8x128xf32>
    %9 = arith.addf %7, %8 : vector<8x128xf32>
    %10 = math.tanh %9 : vector<8x128xf32>
    %cst_8 = arith.constant dense<0.000000e+00> : vector<8x128xf32>
    %11 = tpu.matmul %10, %2, %cst_8 {dimension_numbers = #tpu.dot_dimension_numbers<[1], [0], [0], [1], [0, 0, 1, 1], [], []>} : vector<8x128xf32>, vector<128x128xf32>, vector<8x128xf32> -> vector<8x128xf32>
    %12 = vector.broadcast %5 : vector<1x128xf32> to vector<8x128xf32>
    %13 = arith.addf %11, %12 : vector<8x128xf32>
    %14 = math.tanh %13 : vector<8x128xf32>
    %cst_9 = arith.constant dense<0.000000e+00> : vector<8x128xf32>
    %15 = tpu.matmul %14, %3, %cst_9 {dimension_numbers = #tpu.dot_dimension_numbers<[1], [0], [0], [1], [0, 0, 1, 1], [], []>} : vector<8x128xf32>, vector<128x128xf32>, vector<8x128xf32> -> vector<8x128xf32>
    %16 = vector.broadcast %6 : vector<1x128xf32> to vector<8x128xf32>
    %17 = arith.addf %15, %16 : vector<8x128xf32>
    %18 = tpu.iota {dimensions = array<i32: 1>} : vector<8x128xi32>
    %c4_i32 = arith.constant 4 : i32
    %19 = vector.broadcast %c4_i32 : i32 to vector<8x128xi32>
    %20 = arith.cmpi slt, %18, %19 : vector<8x128xi32>
    %cst_10 = arith.constant -1.000000e+30 : f32
    %21 = vector.broadcast %cst_10 : f32 to vector<8x128xf32>
    %22 = arith.select %20, %17, %21 : vector<8x128xi1>, vector<8x128xf32>
    %cst_11 = arith.constant dense<0xFF800000> : vector<8xf32>
    %23 = vector.multi_reduction <maximumf>, %22, %cst_11 [1] : vector<8x128xf32> to vector<8xf32>
    %24 = vector.shape_cast %23 : vector<8xf32> to vector<8x1xf32>
    %25 = vector.broadcast %24 : vector<8x1xf32> to vector<8x128xf32>
    %26 = arith.subf %22, %25 : vector<8x128xf32>
    %27 = math.exp %26 : vector<8x128xf32>
    %cst_12 = arith.constant 0.000000e+00 : f32
    %28 = vector.broadcast %cst_12 : f32 to vector<8x128xf32>
    %29 = arith.select %20, %27, %28 : vector<8x128xi1>, vector<8x128xf32>
    %cst_13 = arith.constant dense<0.000000e+00> : vector<8xf32>
    %30 = vector.multi_reduction <add>, %29, %cst_13 [1] : vector<8x128xf32> to vector<8xf32>
    %31 = vector.shape_cast %30 : vector<8xf32> to vector<8x1xf32>
    %32 = vector.broadcast %31 : vector<8x1xf32> to vector<8x128xf32>
    %33 = arith.divf %29, %32 : vector<8x128xf32>
    %34 = arith.select %20, %33, %17 : vector<8x128xi1>, vector<8x128xf32>
    %c0_14 = arith.constant 0 : index
    %c0_15 = arith.constant 0 : index
    %35 = vector.load %arg2[%c0_14, %c0_15] : memref<8x128xf32, #tpu.memory_space<vmem>>, vector<8x128xf32>
    tpu.vector_store %arg2[%c0_14, %c0_15], %34 {strides = array<i32>} : memref<8x128xf32, #tpu.memory_space<vmem>>, vector<8x128xf32>,
    return
  }
}

</mosaic_0001>

<llo_original>
// kernel: tpu_custom_call.1
$region0: #{tpu_custom_call.1}
  #allocation0 [shape = 'u32[]', space=smem, size = 0x4, offset = 0x4, fixed_abs, tag = 'smem constant byte address 0x4 - core index']
  #allocation1 [shape = 'u32[144,128]{1,0:T(1,128)}', space=vmem, size = 0x12000, scoped, tag = 'internal scratch']
  %s0 = inlined_call_operand.hbm [shape: f32[8,16], index: 0, kind: input, shape index: {}]
  %s1 = inlined_call_operand.hbm [shape: f32[280,128], index: 1, kind: input, shape index: {}]
  %s2 = inlined_call_operand.hbm [shape: f32[8,128], index: 2, kind: output, shape index: {}]
  %s3 = sld [smem:[#allocation0]]
  $region26: #{tpu_custom_call.1} parent=0
    _
  %s5 = ssub.s32 1, %s3
  %s6 = scalar_select 0, %s5, %s3
  $region1: #{tpu_custom_call.1} parent=0
    #allocation2 [shape = 'u8[4096]{0}', space=vmem, size = 0x1000, scoped, tag = 'input window, operand 0, single buffered']
    #allocation3 [shape = 's32[1]{0}', space=sflag, size = 0x4, scoped, tag = 'scoped memory for tpu_custom_call.1']
    #allocation4 [shape = 's32[1]{0}', space=sflag, size = 0x4, scoped, tag = 'scoped memory for tpu_custom_call.1']
    #allocation5 [shape = 'u8[143360]{0}', space=vmem, size = 0x23000, scoped, tag = 'input window, operand 1, single buffered']
    #allocation6 [shape = 's32[1]{0}', space=sflag, size = 0x4, scoped, tag = 'scoped memory for tpu_custom_call.1']
    #allocation7 [shape = 'u8[4096]{0}', space=vmem, size = 0x1000, scoped, tag = 'output window, operand 0, single buffered']
    %7 = vsyncpa [#allocation3], 0
    %8 = vsyncpa [#allocation6], 0
    %9 = vsyncpa [#allocation4], 0
    // Predicated region
    $region2: #{tpu_custom_call.1} parent=1 // pred_check
      _
    $region3: #{tpu_custom_call.1} parent=1 // pred_check_branch
      %11 = sbr.rel (0) target = $region5
    $region4: #{tpu_custom_call.1} parent=1 // pred_region
      %s13 = ssub.s32 128, 128
      %14 = vsyncadd [#allocation3], %s13
      %s16 = sshll.u32 [#allocation2], 4
      %s17 = int_to_ptr.vmem [resolvable:$true] %s16
      %19 = dma.hbm_to_vmem [thread:$0]  %s0, 128, %s17, [#allocation3]
    $region5: #{tpu_custom_call.1} parent=1 // pred_fallthru
      _
    // Predicated region
    $region6: #{tpu_custom_call.1} parent=1 // pred_check
      _
    $region7: #{tpu_custom_call.1} parent=1 // pred_check_branch
      %21 = sbr.rel (0) target = $region9
    $region8: #{tpu_custom_call.1} parent=1 // pred_region
      %s23 = ssub.s32 4480, 4480
      %24 = vsyncadd [#allocation6], %s23
      %s25 = sshll.u32 [#allocation5], 4
      %s26 = int_to_ptr.vmem [resolvable:$true] %s25
      %31 = dma.hbm_to_vmem [thread:$0]  %s1, 4480, %s26, [#allocation6], 128, 128, 8
    $region9: #{tpu_custom_call.1} parent=1 // pred_fallthru
      _
    // Predicated region
    $region10: #{tpu_custom_call.1} parent=1 // pred_check
      _
    $region11: #{tpu_custom_call.1} parent=1 // pred_check_branch
      %33 = sbr.rel (0) target = $region13
    $region12: #{tpu_custom_call.1} parent=1 // pred_region
      %34 = dma.done [#allocation3], 128
    $region13: #{tpu_custom_call.1} parent=1 // pred_fallthru
      _
    // Predicated region
    $region14: #{tpu_custom_call.1} parent=1 // pred_check
      _
    $region15: #{tpu_custom_call.1} parent=1 // pred_check_branch
      %36 = sbr.rel (0) target = $region17
    $region16: #{tpu_custom_call.1} parent=1 // pred_region
      %37 = dma.done [#allocation6], 4480
    $region17: #{tpu_custom_call.1} parent=1 // pred_fallthru
      _
    %v38 = vld [vmem:[#allocation2] sm:$0xff]
    %v39 = vld [vmem:[#allocation5] sm:$0xff]
    %v40 = vld [vmem:[#allocation5 + $0x8] sm:$0xff]
    %v41 = vld [vmem:[#allocation5 + $0x10] sm:$0xff]
    %v42 = vld [vmem:[#allocation5 + $0x18] sm:$0xff]
    %v43 = vld [vmem:[#allocation5 + $0x20] sm:$0xff]
    %v44 = vld [vmem:[#allocation5 + $0x28] sm:$0xff]
    %v45 = vld [vmem:[#allocation5 + $0x30] sm:$0xff]
    %v46 = vld [vmem:[#allocation5 + $0x38] sm:$0xff]
    %v47 = vld [vmem:[#allocation5 + $0x40] sm:$0xff]
    %v48 = vld [vmem:[#allocation5 + $0x48] sm:$0xff]
    %v49 = vld [vmem:[#allocation5 + $0x50] sm:$0xff]
    %v50 = vld [vmem:[#allocation5 + $0x58] sm:$0xff]
    %v51 = vld [vmem:[#allocation5 + $0x60] sm:$0xff]
    %v52 = vld [vmem:[#allocation5 + $0x68] sm:$0xff]
    %v53 = vld [vmem:[#allocation5 + $0x70] sm:$0xff]
    %v54 = vld [vmem:[#allocation5 + $0x78] sm:$0xff]
    %v55 = vld [vmem:[#allocation5 + $0x80] sm:$0xff]
    %v56 = vld [vmem:[#allocation5 + $0x88] sm:$0xff]
    %v57 = vld [vmem:[#allocation5 + $0x90] sm:$0xff]
    %v58 = vld [vmem:[#allocation5 + $0x98] sm:$0xff]
    %v59 = vld [vmem:[#allocation5 + $0xa0] sm:$0xff]
    %v60 = vld [vmem:[#allocation5 + $0xa8] sm:$0xff]
    %v61 = vld [vmem:[#allocation5 + $0xb0] sm:$0xff]
    %v62 = vld [vmem:[#allocation5 + $0xb8] sm:$0xff]
    %v63 = vld [vmem:[#allocation5 + $0xc0] sm:$0xff]
    %v64 = vld [vmem:[#allocation5 + $0xc8] sm:$0xff]
    %v65 = vld [vmem:[#allocation5 + $0xd0] sm:$0xff]
    %v66 = vld [vmem:[#allocation5 + $0xd8] sm:$0xff]
    %v67 = vld [vmem:[#allocation5 + $0xe0] sm:$0xff]
    %v68 = vld [vmem:[#allocation5 + $0xe8] sm:$0xff]
    %v69 = vld [vmem:[#allocation5 + $0xf0] sm:$0xff]
    %v70 = vld [vmem:[#allocation5 + $0xf8] sm:$0xff]
    %v71 = vld [vmem:[#allocation5 + $0x100] sm:$0xff]
    %v72 = vld [vmem:[#allocation5 + $0x108] sm:$0xff]
    %v73 = vld [vmem:[#allocation5 + $0x110] sm:$0x1]
    %v74 = vld [vmem:[#allocation5 + $0x111] sm:$0x1]
    %v75 = vld [vmem:[#allocation5 + $0x112] sm:$0x1]
    %v76 = vlaneseq
    %v77 = vshrl.u32 %v76, 7
    %v78 = vsub.s32 0, %v77
    %v79 = vrot.slane %v73, %v78
    %vm80 = vcmask 130048
    %v82 = vsel %vm80, %v38, 0
    %84 = vmatprep.subr.mxu0 0.0
    %85 = vmatpush1.msra.mxu0 %v39
    %86 = vmatprep.subr.mxu0 0.0
    %87 = vmatpush1.msra.mxu0 %v40
    %88 = vmatprep.subr.mxu0 0.0
    %89 = vmatpush1.msra.mxu0 0.0
    %90 = vmatprep.subr.mxu0 0.0
    %91 = vmatpush1.msra.mxu0 0.0
    %92 = vmatprep.subr.mxu0 0.0
    %93 = vmatpush1.msra.mxu0 0.0
    %94 = vmatprep.subr.mxu0 0.0
    %95 = vmatpush1.msra.mxu0 0.0
    %96 = vmatprep.subr.mxu0 0.0
    %97 = vmatpush1.msra.mxu0 0.0
    %98 = vmatprep.subr.mxu0 0.0
    %99 = vmatpush1.msra.mxu0 0.0
    %100 = vmatprep.subr.mxu0 0.0
    %101 = vmatpush1.msra.mxu0 0.0
    %102 = vmatprep.subr.mxu0 0.0
    %103 = vmatpush1.msra.mxu0 0.0
    %104 = vmatprep.subr.mxu0 0.0
    %105 = vmatpush1.msra.mxu0 0.0
    %106 = vmatprep.subr.mxu0 0.0
    %107 = vmatpush1.msra.mxu0 0.0
    %108 = vmatprep.subr.mxu0 0.0
    %109 = vmatpush1.msra.mxu0 0.0
    %110 = vmatprep.subr.mxu0 0.0
    %111 = vmatpush1.msra.mxu0 0.0
    %112 = vmatprep.subr.mxu0 0.0
    %113 = vmatpush1.msra.mxu0 0.0
    %114 = vmatprep.subr.mxu0 0.0
    %115 = vmatpush1.msra.mxu0 0.0
    %116 = vmatprep.subr.mxu0 0.0
    %117 = vmatpush1.msra.mxu0 0.0
    %118 = vmatprep.subr.mxu0 0.0
    %119 = vmatpush1.msra.mxu0 0.0
    %120 = vmatprep.subr.mxu0 0.0
    %121 = vmatpush1.msra.mxu0 0.0
    %122 = vmatprep.subr.mxu0 0.0
    %123 = vmatpush1.msra.mxu0 0.0
    %124 = vmatprep.subr.mxu0 0.0
    %125 = vmatpush1.msra.mxu0 0.0
    %126 = vmatprep.subr.mxu0 0.0
    %127 = vmatpush1.msra.mxu0 0.0
    %128 = vmatprep.subr.mxu0 0.0
    %129 = vmatpush1.msra.mxu0 0.0
    %130 = vmatprep.subr.mxu0 0.0
    %131 = vmatpush1.msra.mxu0 0.0
    %132 = vmatprep.subr.mxu0 0.0
    %133 = vmatpush1.msra.mxu0 0.0
    %134 = vmatprep.subr.mxu0 0.0
    %135 = vmatpush1.msra.mxu0 0.0
    %136 = vmatprep.subr.mxu0 0.0
    %137 = vmatpush1.msra.mxu0 0.0
    %138 = vmatprep.subr.mxu0 0.0
    %139 = vmatpush1.msra.mxu0 0.0
    %140 = vmatprep.subr.mxu0 0.0
    %141 = vmatpush1.msra.mxu0 0.0
    %142 = vmatprep.subr.mxu0 0.0
    %143 = vmatpush1.msra.mxu0 0.0
    %144 = vmatprep.subr.mxu0 0.0
    %145 = vmatpush1.msra.mxu0 0.0
    %146 = vmatprep.subr.mxu0 0.0
    %147 = vmatpush1.msra.mxu0 0.0
    %148 = vmatprep.mubr.f32.mxu0 0.0
    %149 = vmatmul.mubr.f32.gmra.mrb[0].mxu0 %v82
    %v150 = vpop.f32.mrb[0].mxu0
    %v151 = vadd.f32 %v79, %v150
    %v152 = vpop.f32.mrb[0].mxu0
    %153 = vdwg.mxu0
    %v154 = vtanh.pop %v151
    %v155 = vlaneseq
    %v156 = vshrl.u32 %v155, 7
    %v157 = vsub.s32 0, %v156
    %v158 = vrot.slane %v74, %v157
    %159 = vmatprep.subr.mxu0 0.0
    %160 = vmatpush1.msra.mxu0 %v41
    %161 = vmatprep.subr.mxu0 0.0
    %162 = vmatpush1.msra.mxu0 %v42
    %163 = vmatprep.subr.mxu0 0.0
    %164 = vmatpush1.msra.mxu0 %v43
    %165 = vmatprep.subr.mxu0 0.0
    %166 = vmatpush1.msra.mxu0 %v44
    %167 = vmatprep.subr.mxu0 0.0
    %168 = vmatpush1.msra.mxu0 %v45
    %169 = vmatprep.subr.mxu0 0.0
    %170 = vmatpush1.msra.mxu0 %v46
    %171 = vmatprep.subr.mxu0 0.0
    %172 = vmatpush1.msra.mxu0 %v47
    %173 = vmatprep.subr.mxu0 0.0
    %174 = vmatpush1.msra.mxu0 %v48
    %175 = vmatprep.subr.mxu0 0.0
    %176 = vmatpush1.msra.mxu0 %v49
    %177 = vmatprep.subr.mxu0 0.0
    %178 = vmatpush1.msra.mxu0 %v50
    %179 = vmatprep.subr.mxu0 0.0
    %180 = vmatpush1.msra.mxu0 %v51
    %181 = vmatprep.subr.mxu0 0.0
    %182 = vmatpush1.msra.mxu0 %v52
    %183 = vmatprep.subr.mxu0 0.0
    %184 = vmatpush1.msra.mxu0 %v53
    %185 = vmatprep.subr.mxu0 0.0
    %186 = vmatpush1.msra.mxu0 %v54
    %187 = vmatprep.subr.mxu0 0.0
    %188 = vmatpush1.msra.mxu0 %v55
    %189 = vmatprep.subr.mxu0 0.0
    %190 = vmatpush1.msra.mxu0 %v56
    %191 = vmatprep.subr.mxu0 0.0
    %192 = vmatpush1.msra.mxu0 0.0
    %193 = vmatprep.subr.mxu0 0.0
    %194 = vmatpush1.msra.mxu0 0.0
    %195 = vmatprep.subr.mxu0 0.0
    %196 = vmatpush1.msra.mxu0 0.0
    %197 = vmatprep.subr.mxu0 0.0
    %198 = vmatpush1.msra.mxu0 0.0
    %199 = vmatprep.subr.mxu0 0.0
    %200 = vmatpush1.msra.mxu0 0.0
    %201 = vmatprep.subr.mxu0 0.0
    %202 = vmatpush1.msra.mxu0 0.0
    %203 = vmatprep.subr.mxu0 0.0
    %204 = vmatpush1.msra.mxu0 0.0
    %205 = vmatprep.subr.mxu0 0.0
    %206 = vmatpush1.msra.mxu0 0.0
    %207 = vmatprep.subr.mxu0 0.0
    %208 = vmatpush1.msra.mxu0 0.0
    %209 = vmatprep.subr.mxu0 0.0
    %210 = vmatpush1.msra.mxu0 0.0
    %211 = vmatprep.subr.mxu0 0.0
    %212 = vmatpush1.msra.mxu0 0.0
    %213 = vmatprep.subr.mxu0 0.0
    %214 = vmatpush1.msra.mxu0 0.0
    %215 = vmatprep.subr.mxu0 0.0
    %216 = vmatpush1.msra.mxu0 0.0
    %217 = vmatprep.subr.mxu0 0.0
    %218 = vmatpush1.msra.mxu0 0.0
    %219 = vmatprep.subr.mxu0 0.0
    %220 = vmatpush1.msra.mxu0 0.0
    %221 = vmatprep.subr.mxu0 0.0
    %222 = vmatpush1.msra.mxu0 0.0
    %223 = vmatprep.mubr.f32.mxu0 0.0
    %224 = vmatmul.mubr.f32.gmra.mrb[0].mxu0 %v154
    %v225 = vpop.f32.mrb[0].mxu0
    %v226 = vadd.f32 %v158, %v225
    %v227 = vpop.f32.mrb[0].mxu0
    %228 = vdwg.mxu0
    %v229 = vtanh.pop %v226
    %v230 = vlaneseq
    %v231 = vshrl.u32 %v230, 7
    %v232 = vsub.s32 0, %v231
    %v233 = vrot.slane %v75, %v232
    %234 = vmatprep.subr.mxu0 0.0
    %235 = vmatpush1.msra.mxu0 %v57
    %236 = vmatprep.subr.mxu0 0.0
    %237 = vmatpush1.msra.mxu0 %v58
    %238 = vmatprep.subr.mxu0 0.0
    %239 = vmatpush1.msra.mxu0 %v59
    %240 = vmatprep.subr.mxu0 0.0
    %241 = vmatpush1.msra.mxu0 %v60
    %242 = vmatprep.subr.mxu0 0.0
    %243 = vmatpush1.msra.mxu0 %v61
    %244 = vmatprep.subr.mxu0 0.0
    %245 = vmatpush1.msra.mxu0 %v62
    %246 = vmatprep.subr.mxu0 0.0
    %247 = vmatpush1.msra.mxu0 %v63
    %248 = vmatprep.subr.mxu0 0.0
    %249 = vmatpush1.msra.mxu0 %v64
    %250 = vmatprep.subr.mxu0 0.0
    %251 = vmatpush1.msra.mxu0 %v65
    %252 = vmatprep.subr.mxu0 0.0
    %253 = vmatpush1.msra.mxu0 %v66
    %254 = vmatprep.subr.mxu0 0.0
    %255 = vmatpush1.msra.mxu0 %v67
    %256 = vmatprep.subr.mxu0 0.0
    %257 = vmatpush1.msra.mxu0 %v68
    %258 = vmatprep.subr.mxu0 0.0
    %259 = vmatpush1.msra.mxu0 %v69
    %260 = vmatprep.subr.mxu0 0.0
    %261 = vmatpush1.msra.mxu0 %v70
    %262 = vmatprep.subr.mxu0 0.0
    %263 = vmatpush1.msra.mxu0 %v71
    %264 = vmatprep.subr.mxu0 0.0
    %265 = vmatpush1.msra.mxu0 %v72
    %266 = vmatprep.subr.mxu0 0.0
    %267 = vmatpush1.msra.mxu0 0.0
    %268 = vmatprep.subr.mxu0 0.0
    %269 = vmatpush1.msra.mxu0 0.0
    %270 = vmatprep.subr.mxu0 0.0
    %271 = vmatpush1.msra.mxu0 0.0
    %272 = vmatprep.subr.mxu0 0.0
    %273 = vmatpush1.msra.mxu0 0.0
    %274 = vmatprep.subr.mxu0 0.0
    %275 = vmatpush1.msra.mxu0 0.0
    %276 = vmatprep.subr.mxu0 0.0
    %277 = vmatpush1.msra.mxu0 0.0
    %278 = vmatprep.subr.mxu0 0.0
    %279 = vmatpush1.msra.mxu0 0.0
    %280 = vmatprep.subr.mxu0 0.0
    %281 = vmatpush1.msra.mxu0 0.0
    %282 = vmatprep.subr.mxu0 0.0
    %283 = vmatpush1.msra.mxu0 0.0
    %284 = vmatprep.subr.mxu0 0.0
    %285 = vmatpush1.msra.mxu0 0.0
    %286 = vmatprep.subr.mxu0 0.0
    %287 = vmatpush1.msra.mxu0 0.0
    %288 = vmatprep.subr.mxu0 0.0
    %289 = vmatpush1.msra.mxu0 0.0
    %290 = vmatprep.subr.mxu0 0.0
    %291 = vmatpush1.msra.mxu0 0.0
    %292 = vmatprep.subr.mxu0 0.0
    %293 = vmatpush1.msra.mxu0 0.0
    %294 = vmatprep.subr.mxu0 0.0
    %295 = vmatpush1.msra.mxu0 0.0
    %296 = vmatprep.subr.mxu0 0.0
    %297 = vmatpush1.msra.mxu0 0.0
    %298 = vmatprep.mubr.f32.mxu0 0.0
    %299 = vmatmul.mubr.f32.gmra.mrb[0].mxu0 %v229
    %v300 = vpop.f32.mrb[0].mxu0
    %v301 = vadd.f32 %v233, %v300
    %v302 = vpop.f32.mrb[0].mxu0
    %303 = vdwg.mxu0
    %v304 = vlaneseq
    %v305 = vand.u32 %v304, 127
    %vm306 = vcmp.lt.s32.totalorder %v305, 4
    %v307 = vsel %vm306, %v301, -1e+30
    %308 = vmax.xlane.f32.xlu0 %v307
    %v309 = vpop.xlane.xlu0 %308
    %v310 = vsub.f32 %v307, %v309
    %v311 = vmul.f32 %v310, 1.442695
    %v312 = vpow.pop %v311
    %v313 = vsel %vm306, %v312, 0.0
    %314 = vadd.xlane.f32.xlu0 %v313
    %v315 = vpop.xlane.xlu0 %314
    %v316 = vrcp.pop %v315
    %v317 = vmul.f32 %v313, %v316
    %v318 = vsel %vm306, %v317, %v301
    %319 = vst [vmem:[#allocation7] sm:$0xff] %v318
    // Predicated region
    $region18: #{tpu_custom_call.1} parent=1 // pred_check
      _
    $region19: #{tpu_custom_call.1} parent=1 // pred_check_branch
      %321 = sbr.rel (0) target = $region21
    $region20: #{tpu_custom_call.1} parent=1 // pred_region
      %s323 = ssub.s32 128, 128
      %324 = vsyncadd [#allocation4], %s323
      %s326 = sshll.u32 [#allocation7], 4
      %s327 = int_to_ptr.vmem [resolvable:$true] %s326
      %329 = dma.vmem_to_hbm [thread:$0]  %s327, 128, %s2, [#allocation4]
    $region21: #{tpu_custom_call.1} parent=1 // pred_fallthru
      _
    // Predicated region
    $region22: #{tpu_custom_call.1} parent=1 // pred_check
      _
    $region23: #{tpu_custom_call.1} parent=1 // pred_check_branch
      %331 = sbr.rel (0) target = $region25
    $region24: #{tpu_custom_call.1} parent=1 // pred_region
      %332 = dma.done [#allocation4], 128
    $region25: #{tpu_custom_call.1} parent=1 // pred_fallthru
      _
    %333 = vsyncpa [#allocation3], 1
    %334 = vsyncpa [#allocation6], 1
    %335 = vsyncpa [#allocation4], 1

</llo_original>
